<compile_context>
chip_gen: v5e
topology: v5e:2x2
jax: 0.10.0
libtpu: 0.0.40
codegen_flags: <defaults>
</compile_context>

<pallas_src>
import functools
import math

import jax
import jax.numpy as jnp
from jax import lax
from jax.experimental import pallas as pl
from jax.experimental.pallas import tpu as pltpu


def _round_up(x, m):
    return ((x + m - 1) // m) * m


def _cdiv(a, b):
    return -(-a // b)


def _conv1d_kernel(x_hbm, w_ref, b_ref, o_ref, xwin, sem, *,
                   K, dilation, stride, c_in_p, tile_l, win_w, use_fold):
    # x_hbm : (N, stride*C_in_p, L_q_pad)   raw HBM ref (pl.ANY) — halo windows DMA'd here
    # w_ref : (C_out, K*C_in_p) if use_fold else (K, C_out, C_in_p)
    # b_ref : (C_out, 1) f32
    # o_ref : (C_out, tile_l)
    # xwin  : VMEM scratch (2, stride*C_in_p, win_w)   double-buffered halo window
    # sem   : DMA semaphores (2,)
    n = pl.program_id(0)
    j = pl.program_id(1)
    num_j = pl.num_programs(1)
    slot = j % 2

    def window_copy(jj, sl):
        off = jj * tile_l                      # tile_l is a multiple of 128
        return pltpu.make_async_copy(
            x_hbm.at[n, :, pl.ds(off, win_w)], xwin.at[sl], sem.at[sl])

    # Prime the pipeline at the start of each batch row.
    @pl.when(j == 0)
    def _():
        window_copy(0, 0).start()

    # Prefetch the next tile's halo window into the other slot (overlaps with compute).
    @pl.when(j + 1 < num_j)
    def _():
        window_copy(j + 1, 1 - slot).start()

    # Wait for the current tile's window.
    window_copy(j, slot).wait()

    # Gather the K dilated taps — static unroll; all reads are unit-stride lane slices
    # (stride already folded into the channel/phase axis by the wrapper).
    taps = []
    for k in range(K):
        qk = (k * dilation) // stride          # lane offset inside the window
        pk = (k * dilation) % stride           # polyphase block -> channel offset
        r0 = pk * c_in_p
        taps.append(xwin[slot, r0:r0 + c_in_p, qk:qk + tile_l])

    if use_fold:
        # Small C_in: fold all taps into one deep-contraction MXU matmul.
        xcat = taps[0] if K == 1 else jnp.concatenate(taps, axis=0)
        acc = jnp.dot(w_ref[...], xcat, preferred_element_type=jnp.float32)
    else:
        # Large C_in: K accumulating dots, no materialized (K*C_in_p, tile_l) slab.
        acc = jnp.dot(w_ref[0], taps[0], preferred_element_type=jnp.float32)
        for k in range(1, K):
            acc = acc + jnp.dot(w_ref[k], taps[k], preferred_element_type=jnp.float32)

    o_ref[...] = (acc + b_ref[...]).astype(o_ref.dtype)


def dilated_conv1d(x, weight, bias=None, *, dilation=1, stride=1,
                   tile_l=None, compute_dtype=None):
    """Equivalent to nn.Conv1d(C_in, C_out, K, padding=0, dilation, stride, bias)."""
    assert dilation >= 1 and stride >= 1
    N, C_in, L = x.shape
    C_out, C_in_w, K = weight.shape
    assert C_in == C_in_w
    if bias is None:
        bias = jnp.zeros((C_out,), x.dtype)
    L_out = (L - dilation * (K - 1) - 1) // stride + 1
    assert L_out > 0

    out_dtype = x.dtype
    cdtype = jnp.dtype(compute_dtype) if compute_dtype is not None else jnp.dtype(x.dtype)
    x = x.astype(cdtype)
    weight = weight.astype(cdtype)
    itemsize = cdtype.itemsize
    out_itemsize = jnp.dtype(out_dtype).itemsize

    # --- dtype-aware sublane padding of the contraction axis: 8 (f32) / 16 (bf16) / 32 (i8)
    pack = max(8, 32 // itemsize)
    C_in_p = _round_up(C_in, pack)
    if C_in_p != C_in:
        x = jnp.pad(x, ((0, 0), (0, C_in_p - C_in), (0, 0)))
        weight = jnp.pad(weight, ((0, 0), (0, C_in_p - C_in), (0, 0)))

    qk_max = (dilation * (K - 1)) // stride    # halo (in output-rate / polyphase samples)

    # --- output tiling: lane-dense, minimize L_out padding around a ~512 target ---
    if tile_l is None:
        target = 512
        tile_l = _round_up(_cdiv(L_out, max(1, _cdiv(L_out, target))), 128)
    tile_l = max(128, _round_up(tile_l, 128))
    tile_l = min(tile_l, _round_up(L_out, 128))

    use_fold = (K == 1) or (C_in_p < 128)

    # --- VMEM budget: compute from actual buffers, cap by the device's VMEM capacity ---
    try:
        vmem_cap = int(pltpu.get_tpu_info().vmem_capacity_bytes)
    except Exception:
        vmem_cap = 64 * 1024 * 1024            # conservative (v7x per-core) fallback
    w_bytes = C_out * K * C_in_p * itemsize
    b_bytes = C_out * 4

    def _vmem_need(tl):
        ww = _round_up(tl + qk_max, 128)
        need = 2 * stride * C_in_p * ww * itemsize       # manual double-buffered x window
        need += 2 * w_bytes + 2 * b_bytes                # pipelined weight / bias buffers
        need += 2 * C_out * tl * out_itemsize            # pipelined output tile
        need += C_out * tl * 4                           # f32 accumulator temp
        if use_fold and K > 1:
            need += K * C_in_p * tl * itemsize           # materialized tap stack
        return need

    budget = int(0.45 * vmem_cap)
    while tile_l > 128 and _vmem_need(tile_l) > budget:
        tile_l -= 128

    num_tiles = _cdiv(L_out, tile_l)
    L_out_pad = num_tiles * tile_l
    win_w = _round_up(tile_l + qk_max, 128)
    L_q_pad = (num_tiles - 1) * tile_l + win_w           # polyphase length incl. halo slack

    # --- length fixup + polyphase stride folding (kernel always does unit-stride reads) ---
    T = L_q_pad * stride
    if x.shape[2] < T:
        x = jnp.pad(x, ((0, 0), (0, 0), (0, T - x.shape[2])))
    elif x.shape[2] > T:
        x = x[:, :, :T]                                  # tail never feeds a valid output
    if stride > 1:
        xp = x.reshape(N, C_in_p, L_q_pad, stride)
        xp = jnp.transpose(xp, (0, 3, 1, 2)).reshape(N, stride * C_in_p, L_q_pad)
    else:
        xp = x

    # --- weight layout per compute strategy ---
    if use_fold:
        w_arr = jnp.transpose(weight, (0, 2, 1)).reshape(C_out, K * C_in_p)   # (o, k*c)
        w_spec = pl.BlockSpec((C_out, K * C_in_p), lambda n, j: (0, 0))
    else:
        w_arr = jnp.transpose(weight, (2, 0, 1))                              # (k, o, c)
        w_spec = pl.BlockSpec((K, C_out, C_in_p), lambda n, j: (0, 0, 0))
    bias2d = bias.reshape(C_out, 1).astype(jnp.float32)

    kernel = functools.partial(
        _conv1d_kernel, K=K, dilation=dilation, stride=stride,
        c_in_p=C_in_p, tile_l=tile_l, win_w=win_w, use_fold=use_fold)

    need = _vmem_need(tile_l)
    vmem_limit = max(32 * 1024 * 1024, 2 * need)
    vmem_limit = min(vmem_limit, int(0.85 * vmem_cap))
    vmem_limit = max(vmem_limit, need + (4 << 20))       # never starve below actual need

    flops = 2 * N * C_out * C_in * K * L_out
    bytes_accessed = int(
        N * stride * C_in_p * L_q_pad * itemsize
        + w_arr.size * itemsize + bias2d.size * 4
        + N * C_out * L_out_pad * out_itemsize)

    out = pl.pallas_call(
        kernel,
        out_shape=jax.ShapeDtypeStruct((N, C_out, L_out_pad), out_dtype),
        grid=(N, num_tiles),
        in_specs=[
            pl.BlockSpec(memory_space=pl.ANY),           # x stays in HBM; manual halo DMA
            w_spec,
            pl.BlockSpec((C_out, 1), lambda n, j: (0, 0)),
        ],
        out_specs=pl.BlockSpec((None, C_out, tile_l), lambda n, j: (n, 0, j)),
        scratch_shapes=[
            pltpu.VMEM((2, stride * C_in_p, win_w), cdtype),   # double-buffered halo window
            pltpu.SemaphoreType.DMA((2,)),
        ],
        compiler_params=pltpu.CompilerParams(
            # n: megacore split; j: kept in-order for the manual DMA prefetch chain.
            dimension_semantics=("parallel", "arbitrary"),
            vmem_limit_bytes=int(vmem_limit),
        ),
        cost_estimate=pl.CostEstimate(
            flops=flops, transcendentals=0, bytes_accessed=bytes_accessed),
    )(xp, w_arr, bias2d)

    return out[:, :, :L_out]


def _reference_conv1d(x, weight, bias, *, dilation=1, stride=1):
    # Pure-JAX reference (same semantics as torch.nn.Conv1d with padding=0).
    out = lax.conv_general_dilated(
        x, weight,
        window_strides=(stride,), padding="VALID", rhs_dilation=(dilation,),
        dimension_numbers=("NCH", "OIH", "NCH"))
    return out + bias.reshape(1, -1, 1)


def _run_case(key, *, N, C_in, C_out, L, K, dilation, stride,
              tile_l=None, compute_dtype=None, atol=2e-4, rtol=2e-4):
    kx, kw, kb = jax.random.split(key, 3)
    fan_in = C_in * K
    bound = 1.0 / math.sqrt(fan_in)
    x = jax.random.normal(kx, (N, C_in, L), dtype=jnp.float32)
    weight = jax.random.uniform(kw, (C_out, C_in, K), jnp.float32, -bound, bound)
    bias = jax.random.uniform(kb, (C_out,), jnp.float32, -bound, bound)

    out = dilated_conv1d(x, weight, bias, dilation=dilation, stride=stride,
                         tile_l=tile_l, compute_dtype=compute_dtype)
    out = jax.block_until_ready(out)

    ref = _reference_conv1d(x, weight, bias, dilation=dilation, stride=stride)
    assert out.shape == ref.shape, (out.shape, ref.shape)
    err = float(jnp.max(jnp.abs(out.astype(jnp.float32) - ref)))
    assert jnp.allclose(out.astype(jnp.float32), ref, atol=atol, rtol=rtol), err


if __name__ == "__main__":
    key = jax.random.PRNGKey(0)
    k0, k1, k2, k3 = jax.random.split(key, 4)

    # Small shape from the module's forward (im2col-fold path, stride 1, single tile).
    _run_case(k0, N=2, C_in=4, C_out=8, L=16, K=3, dilation=2, stride=1)

    # Strided + dilated, multi-tile output: exercises polyphase stride folding, the
    # double-buffered halo prefetch chain, and L_out not a multiple of tile_l.
    _run_case(k1, N=2, C_in=6, C_out=10, L=530, K=3, dilation=2, stride=2, tile_l=128)

    # Larger channel count -> K accumulating-dot path (no tap concatenate), stride 2.
    _run_case(k2, N=1, C_in=160, C_out=32, L=300, K=3, dilation=3, stride=2)

    # Optional bf16 compute path (dtype-aware 16-channel padding, f32 accumulation).
    _run_case(k3, N=2, C_in=4, C_out=8, L=16, K=3, dilation=2, stride=1,
              compute_dtype=jnp.bfloat16, atol=2e-2, rtol=2e-2)

    print("KERNEL_OK")
</pallas_src>

<mosaic_0001>
module attributes {stable_mosaic.version = 11 : i64} {
  func.func @_conv1d_kernel(%arg0: i32, %arg1: i32, %arg2: memref<2x8x256xf32, #tpu.memory_space<any>>, %arg3: memref<8x24xf32, #tpu.memory_space<vmem>>, %arg4: memref<8x1xf32, #tpu.memory_space<vmem>>, %arg5: memref<1x8x128xf32, #tpu.memory_space<vmem>>, %arg6: memref<2x8x256xf32, #tpu.memory_space<vmem>>, %arg7: memref<2x!tpu.dma_semaphore, #tpu.memory_space<semaphore_mem>>) attributes {dimension_semantics = [#tpu.dimension_semantics<parallel>, #tpu.dimension_semantics<arbitrary>], iteration_bounds = array<i64: 2, 1>, scalar_prefetch = 0 : i64, scratch_operands = 2 : i64, tpu.core_type = #tpu.core_type<tc>, window_params = [{}, {pipeline_mode = #tpu.pipeline_mode<synchronous>, transform_indices = @transform_1, window_bounds = array<i64: 8, 24>}, {pipeline_mode = #tpu.pipeline_mode<synchronous>, transform_indices = @transform_2, window_bounds = array<i64: 8, 1>}, {transform_indices = @transform_3, window_bounds = array<i64: 1, 8, 128>}]} {
    %c2_i32 = arith.constant 2 : i32
    %c0_i32 = arith.constant 0 : i32
    %0 = arith.cmpi eq, %c2_i32, %c0_i32 : i32
    %c1_i32 = arith.constant 1 : i32
    %1 = arith.select %0, %c1_i32, %c2_i32 : i32
    %2 = arith.remsi %arg1, %1 : i32
    %c0_i32_0 = arith.constant 0 : i32
    %3 = arith.cmpi ne, %2, %c0_i32_0 : i32
    %c0_i32_1 = arith.constant 0 : i32
    %4 = arith.cmpi slt, %2, %c0_i32_1 : i32
    %c0_i32_2 = arith.constant 0 : i32
    %5 = arith.cmpi slt, %1, %c0_i32_2 : i32
    %6 = arith.xori %4, %5 : i1
    %7 = arith.andi %6, %3 : i1
    %8 = arith.addi %2, %1 : i32
    %9 = arith.select %7, %8, %2 : i32
    %c0_i32_3 = arith.constant 0 : i32
    %10 = arith.cmpi eq, %arg1, %c0_i32_3 : i32
    %11 = arith.extui %10 : i1 to i32
    %c0_i32_4 = arith.constant 0 : i32
    %12 = arith.cmpi ne, %11, %c0_i32_4 : i32
    scf.if %12 {
      %c0_i32_21 = arith.constant 0 : i32
      %c0_i32_22 = arith.constant 0 : i32
      %c0_i32_23 = arith.constant 0 : i32
      %c0_i32_24 = arith.constant 0 : i32
      %42 = tpu.memref_slice %arg2[%arg0, %c0_i32_23, %c0_i32_24] : memref<2x8x256xf32, #tpu.memory_space<any>> -> memref<1x8x256xf32, #tpu.memory_space<any>>
      %43 = tpu.memref_squeeze %42 : memref<1x8x256xf32, #tpu.memory_space<any>> -> memref<8x256xf32, #tpu.memory_space<any>>
      %c0_i32_25 = arith.constant 0 : i32
      %c0_i32_26 = arith.constant 0 : i32
      %44 = tpu.memref_slice %arg6[%c0_i32_21, %c0_i32_25, %c0_i32_26] : memref<2x8x256xf32, #tpu.memory_space<vmem>> -> memref<1x8x256xf32, #tpu.memory_space<vmem>>
      %45 = tpu.memref_squeeze %44 : memref<1x8x256xf32, #tpu.memory_space<vmem>> -> memref<8x256xf32, #tpu.memory_space<vmem>>
      %46 = tpu.memref_slice %arg7[%c0_i32_22] : memref<2x!tpu.dma_semaphore, #tpu.memory_space<semaphore_mem>> -> memref<1x!tpu.dma_semaphore, #tpu.memory_space<semaphore_mem>>
      %47 = tpu.memref_squeeze %46 : memref<1x!tpu.dma_semaphore, #tpu.memory_space<semaphore_mem>> -> memref<!tpu.dma_semaphore, #tpu.memory_space<semaphore_mem>>
      tpu.enqueue_dma source(%43 : memref<8x256xf32, #tpu.memory_space<any>>) target(%45 : memref<8x256xf32, #tpu.memory_space<vmem>>) target_semaphore(%47 : memref<!tpu.dma_semaphore, #tpu.memory_space<semaphore_mem>>)
    } else {
    }
    %c1_i32_5 = arith.constant 1 : i32
    %13 = arith.addi %arg1, %c1_i32_5 : i32
    %c1_i32_6 = arith.constant 1 : i32
    %14 = arith.cmpi slt, %13, %c1_i32_6 : i32
    %15 = arith.extui %14 : i1 to i32
    %c0_i32_7 = arith.constant 0 : i32
    %16 = arith.cmpi ne, %15, %c0_i32_7 : i32
    scf.if %16 {
      %c1_i32_21 = arith.constant 1 : i32
      %42 = arith.addi %arg1, %c1_i32_21 : i32
      %c1_i32_22 = arith.constant 1 : i32
      %43 = arith.subi %c1_i32_22, %9 : i32
      %c128_i32_23 = arith.constant 128 : i32
      %44 = arith.muli %42, %c128_i32_23 : i32
      %c0_i32_24 = arith.constant 0 : i32
      %45 = tpu.memref_slice %arg2[%arg0, %c0_i32_24, %44] : memref<2x8x256xf32, #tpu.memory_space<any>> -> memref<1x8x256xf32, #tpu.memory_space<any>>
      %46 = tpu.memref_squeeze %45 : memref<1x8x256xf32, #tpu.memory_space<any>> -> memref<8x256xf32, #tpu.memory_space<any>>
      %c0_i32_25 = arith.constant 0 : i32
      %c0_i32_26 = arith.constant 0 : i32
      %47 = tpu.memref_slice %arg6[%43, %c0_i32_25, %c0_i32_26] : memref<2x8x256xf32, #tpu.memory_space<vmem>> -> memref<1x8x256xf32, #tpu.memory_space<vmem>>
      %48 = tpu.memref_squeeze %47 : memref<1x8x256xf32, #tpu.memory_space<vmem>> -> memref<8x256xf32, #tpu.memory_space<vmem>>
      %49 = tpu.memref_slice %arg7[%43] : memref<2x!tpu.dma_semaphore, #tpu.memory_space<semaphore_mem>> -> memref<1x!tpu.dma_semaphore, #tpu.memory_space<semaphore_mem>>
      %50 = tpu.memref_squeeze %49 : memref<1x!tpu.dma_semaphore, #tpu.memory_space<semaphore_mem>> -> memref<!tpu.dma_semaphore, #tpu.memory_space<semaphore_mem>>
      tpu.enqueue_dma source(%46 : memref<8x256xf32, #tpu.memory_space<any>>) target(%48 : memref<8x256xf32, #tpu.memory_space<vmem>>) target_semaphore(%50 : memref<!tpu.dma_semaphore, #tpu.memory_space<semaphore_mem>>)
    } else {
    }
    %c128_i32 = arith.constant 128 : i32
    %17 = arith.muli %arg1, %c128_i32 : i32
    %c0_i32_8 = arith.constant 0 : i32
    %18 = tpu.memref_slice %arg2[%arg0, %c0_i32_8, %17] : memref<2x8x256xf32, #tpu.memory_space<any>> -> memref<1x8x256xf32, #tpu.memory_space<any>>
    %19 = tpu.memref_squeeze %18 : memref<1x8x256xf32, #tpu.memory_space<any>> -> memref<8x256xf32, #tpu.memory_space<any>>
    %c0_i32_9 = arith.constant 0 : i32
    %c0_i32_10 = arith.constant 0 : i32
    %20 = tpu.memref_slice %arg6[%9, %c0_i32_9, %c0_i32_10] : memref<2x8x256xf32, #tpu.memory_space<vmem>> -> memref<1x8x256xf32, #tpu.memory_space<vmem>>
    %21 = tpu.memref_squeeze %20 : memref<1x8x256xf32, #tpu.memory_space<vmem>> -> memref<8x256xf32, #tpu.memory_space<vmem>>
    %22 = tpu.memref_slice %arg7[%9] : memref<2x!tpu.dma_semaphore, #tpu.memory_space<semaphore_mem>> -> memref<1x!tpu.dma_semaphore, #tpu.memory_space<semaphore_mem>>
    %23 = tpu.memref_squeeze %22 : memref<1x!tpu.dma_semaphore, #tpu.memory_space<semaphore_mem>> -> memref<!tpu.dma_semaphore, #tpu.memory_space<semaphore_mem>>
    tpu.wait_dma2 semaphore(%23 : memref<!tpu.dma_semaphore, #tpu.memory_space<semaphore_mem>>) src(%19 : memref<8x256xf32, #tpu.memory_space<any>>) dst(%21 : memref<8x256xf32, #tpu.memory_space<vmem>>)
    %24 = arith.index_cast %9 : i32 to index
    %c0 = arith.constant 0 : index
    %c0_11 = arith.constant 0 : index
    %25 = vector.load %arg6[%24, %c0, %c0_11] : memref<2x8x256xf32, #tpu.memory_space<vmem>>, vector<1x8x128xf32>
    %26 = vector.shape_cast %25 : vector<1x8x128xf32> to vector<8x128xf32>
    %27 = arith.index_cast %9 : i32 to index
    %c0_12 = arith.constant 0 : index
    %c2 = arith.constant 2 : index
    %28 = vector.load %arg6[%27, %c0_12, %c2] : memref<2x8x256xf32, #tpu.memory_space<vmem>>, vector<1x8x128xf32>
    %29 = vector.shape_cast %28 : vector<1x8x128xf32> to vector<8x128xf32>
    %30 = arith.index_cast %9 : i32 to index
    %c0_13 = arith.constant 0 : index
    %c4 = arith.constant 4 : index
    %31 = vector.load %arg6[%30, %c0_13, %c4] : memref<2x8x256xf32, #tpu.memory_space<vmem>>, vector<1x8x128xf32>
    %32 = vector.shape_cast %31 : vector<1x8x128xf32> to vector<8x128xf32>
    %33 = tpu.concatenate %26, %29, %32 in 0 : vector<8x128xf32>, vector<8x128xf32>, vector<8x128xf32> -> vector<24x128xf32>
    %c0_14 = arith.constant 0 : index
    %c0_15 = arith.constant 0 : index
    %34 = vector.load %arg3[%c0_14, %c0_15] : memref<8x24xf32, #tpu.memory_space<vmem>>, vector<8x24xf32>
    %cst = arith.constant dense<0.000000e+00> : vector<8x128xf32>
    %35 = tpu.matmul %34, %33, %cst {dimension_numbers = #tpu.dot_dimension_numbers<[1], [0], [0], [1], [0, 0, 1, 1], [], []>} : vector<8x24xf32>, vector<24x128xf32>, vector<8x128xf32> -> vector<8x128xf32>
    %c0_16 = arith.constant 0 : index
    %c0_17 = arith.constant 0 : index
    %36 = vector.load %arg4[%c0_16, %c0_17] : memref<8x1xf32, #tpu.memory_space<vmem>>, vector<8x1xf32>
    %37 = vector.broadcast %36 : vector<8x1xf32> to vector<8x128xf32>
    %38 = arith.addf %35, %37 : vector<8x128xf32>
    %c0_18 = arith.constant 0 : index
    %c0_19 = arith.constant 0 : index
    %c0_20 = arith.constant 0 : index
    %39 = vector.load %arg5[%c0_18, %c0_19, %c0_20] : memref<1x8x128xf32, #tpu.memory_space<vmem>>, vector<1x8x128xf32>
    %40 = vector.shape_cast %39 : vector<1x8x128xf32> to vector<8x128xf32>
    %41 = vector.shape_cast %38 : vector<8x128xf32> to vector<1x8x128xf32>
    tpu.vector_store %arg5[%c0_18, %c0_19, %c0_20], %41 {strides = array<i32>} : memref<1x8x128xf32, #tpu.memory_space<vmem>>, vector<1x8x128xf32>,
    return
  }
  func.func @transform_1(%arg0: i32, %arg1: i32) -> (i32, i32) {
    %c0_i32 = arith.constant 0 : i32
    %c0_i32_0 = arith.constant 0 : i32
    %c0_i32_1 = arith.constant 0 : i32
    return %c0_i32, %c0_i32_0 : i32, i32
  }
  func.func @transform_2(%arg0: i32, %arg1: i32) -> (i32, i32) {
    %c0_i32 = arith.constant 0 : i32
    %c0_i32_0 = arith.constant 0 : i32
    %c0_i32_1 = arith.constant 0 : i32
    return %c0_i32, %c0_i32_0 : i32, i32
  }
  func.func @transform_3(%arg0: i32, %arg1: i32) -> (i32, i32, i32) {
    %c0_i32 = arith.constant 0 : i32
    %c0_i32_0 = arith.constant 0 : i32
    return %arg0, %c0_i32, %arg1 : i32, i32, i32
  }
}

</mosaic_0001>

<llo_original>
// kernel: tpu_custom_call.1
$region0: #{tpu_custom_call.1}
  #allocation0 [shape = 'u32[]', space=smem, size = 0x4, offset = 0x4, fixed_abs, tag = 'smem constant byte address 0x4 - core index']
  #allocation1 [shape = 'u32[72,128]{1,0:T(1,128)}', space=vmem, size = 0x9000, scoped, tag = 'internal scratch']
  #allocation2 [shape = 'f32[2,8,256]{2,1,0:T(8,128)}', space=vmem, size = 0x4000, scoped, tag = 'scratch operand']
  #allocation3 [shape = 's32[2]{0}', space=sflag, size = 0x8, scoped, tag = 'scratch operand']
  #allocation6 [shape = 's32[]', space=sflag, size = 0x4, offset = 0, fixed_abs, tag = 'sflag constant byte address 0x0 - dummy sync flag']
  #allocation7 [shape = 's32[]', space=sflag, size = 0x4, offset = 0, fixed_abs, tag = 'sflag constant byte address 0x0 - dummy sync flag']
  #allocation8 [shape = 'u32[]', space=smem, size = 0x4, offset = 0x44, fixed_abs, tag = 'smem constant byte address 0x44 - assertion arg 0']
  #allocation9 [shape = 'u32[]', space=smem, size = 0x4, offset = 0x48, fixed_abs, tag = 'smem constant byte address 0x48 - assertion arg 1']
  #allocation10 [shape = 's32[]', space=sflag, size = 0x4, offset = 0, fixed_abs, tag = 'sflag constant byte address 0x0 - dummy sync flag']
  #allocation11 [shape = 's32[]', space=sflag, size = 0x4, offset = 0, fixed_abs, tag = 'sflag constant byte address 0x0 - dummy sync flag']
  %s0 = inlined_call_operand.hbm [shape: f32[2,8,256], index: 0, kind: input, shape index: {}]
  %s1 = inlined_call_operand.vmem [shape: f32[8,24], index: 1, kind: input, shape index: {}]
  %s2 = inlined_call_operand.vmem [shape: f32[8,1], index: 2, kind: input, shape index: {}]
  %s3 = inlined_call_operand.hbm [shape: f32[2,8,128], index: 3, kind: output, shape index: {}]
  %s4 = sld [smem:[#allocation0]]
  $region57: #{tpu_custom_call.1} parent=0
    _
  %s6 = ssub.s32 1, %s4
  %s7 = scalar_select 0, %s6, %s4
  $region1: #{tpu_custom_call.1} parent=0
    #allocation4 [shape = 'u8[8192]{0}', space=vmem, size = 0x2000, scoped, tag = 'output window, operand 0']
    #allocation5 [shape = 's32[2]{0}', space=sflag, size = 0x8, scoped, tag = 'scoped memory for tpu_custom_call.1']
    %8 = vsyncpa [#allocation5], 0
    %s9 = scalar_lea.sflag [#allocation5], 1
    %10 = vsyncpa %s9, 0
    loop: start=0, step=1, limit=4
    $region2: #{tpu_custom_call.1} parent=1 // loop_pre_header
      _
    $region3: #{tpu_custom_call.1} parent=1 // loop_header
      %s12 = sphi 0, %s16
      %p13 = scmp.ge.s32.totalorder %s12, 4
      %s19 = sphi 0, %s31
      %s20 = sphi 0, %s27
      %s21 = sphi 0, %s19
      %s22 = sphi 0, %s20
      %s23 = sphi 0, %s21
      %s24 = sphi 0, %s22
      %s32 = sphi 0, %s32
      %s34 = sphi 0, %s32
      %s35 = sphi 0, %s34
      %s49 = sphi 0, %s35
      %s53 = sphi 0, %s53
      %s55 = sphi 0, %s53
      %s56 = sphi 0, %s55
      %s70 = sphi 0, %s56
      %s78 = sphi 0, %s80
      %s81 = sphi 0, %s78
      %s82 = sphi 0, %s81
      %s98 = sphi 0, %s82
    $region4: #{tpu_custom_call.1} parent=1 // loop_header_branch
      %15 = sbr.rel (%p13) target = $region8
    $region5: #{tpu_custom_call.1} parent=1 // loop_body
      %s17 = ssub.s32 %s12, 1
      %s18 = ssub.s32 %s12, 2
      %s25 = sadd.s32 1, %s20
      %p26 = scmp.ge.s32.totalorder %s25, 1
      %s27 = scalar_select %p26, 0, %s25
      %s28 = sadd.s32 1, %s19
      %s29 = scalar_select %p26, %s28, %s19
      %p30 = scmp.ge.s32.totalorder %s29, 2
      %s31 = scalar_select %p30, 0, %s29
      %s33 = sadd.s32 %s32, 1
      %p36 = scmp.eq.s32.totalorder %s12, 1
      %p37 = scmp.ne.s32.totalorder %s32, %s34
      %p38 = scmp.eq.s32.totalorder %s12, 0
      %p39 = por %p37, %p38
      %p40 = scmp.ne.s32.totalorder %s32, %s34
      %p41 = scmp.eq.s32.totalorder %s17, 1
      %p42 = por %p40, %p41
      %p43 = scmp.ne.s32.totalorder %s34, %s35
      %p44 = scmp.eq.s32.totalorder %s17, 0
      %p45 = por %p43, %p44
      %p46 = scmp.ne.s32.totalorder %s34, %s35
      %p47 = scmp.eq.s32.totalorder %s18, 1
      %p48 = por %p46, %p47
      %p50 = scmp.ne.s32.totalorder %s35, %s49
      %p51 = scmp.eq.s32.totalorder %s18, 0
      %p52 = por %p50, %p51
      %s54 = sadd.s32 %s53, 1
      %p57 = scmp.eq.s32.totalorder %s12, 1
      %p58 = scmp.ne.s32.totalorder %s53, %s55
      %p59 = scmp.eq.s32.totalorder %s12, 0
      %p60 = por %p58, %p59
      %p61 = scmp.ne.s32.totalorder %s53, %s55
      %p62 = scmp.eq.s32.totalorder %s17, 1
      %p63 = por %p61, %p62
      %p64 = scmp.ne.s32.totalorder %s55, %s56
      %p65 = scmp.eq.s32.totalorder %s17, 0
      %p66 = por %p64, %p65
      %p67 = scmp.ne.s32.totalorder %s55, %s56
      %p68 = scmp.eq.s32.totalorder %s18, 1
      %p69 = por %p67, %p68
      %p71 = scmp.ne.s32.totalorder %s56, %s70
      %p72 = scmp.eq.s32.totalorder %s18, 0
      %p73 = por %p71, %p72
      %s74 = ssub.s32 %s19, %s31
      %s75 = ssub.s32 %s20, %s27
      %s76 = sor.u32 %s74, %s75
      %p77 = scmp.eq.s32.totalorder %s76, 0
      %s79 = sadd.s32 %s78, 1
      %s80 = scalar_select %p77, %s78, %s79
      %p83 = pneg %p77
      %p84 = scmp.eq.s32.totalorder %s12, 1
      %p85 = por %p83, %p84
      %p86 = scmp.ne.s32.totalorder %s78, %s81
      %p87 = scmp.eq.s32.totalorder %s12, 0
      %p88 = por %p86, %p87
      %p89 = scmp.ne.s32.totalorder %s78, %s81
      %p90 = scmp.eq.s32.totalorder %s17, 1
      %p91 = por %p89, %p90
      %p92 = scmp.ne.s32.totalorder %s81, %s82
      %p93 = scmp.eq.s32.totalorder %s17, 0
      %p94 = por %p92, %p93
      %p95 = scmp.ne.s32.totalorder %s81, %s82
      %p96 = scmp.eq.s32.totalorder %s18, 1
      %p97 = por %p95, %p96
      %p99 = scmp.ne.s32.totalorder %s82, %s98
      %p100 = scmp.eq.s32.totalorder %s18, 0
      %p101 = por %p99, %p100
      %p102 = scmp.le.s32.totalorder 1, %s12
      %p103 = scmp.lt.s32.totalorder %s12, 3
      %p104 = pnand %p102, %p103
      %p105 = pneg %p104
      // Predicated region
      $region9: #{tpu_custom_call.1} parent=5 // pred_check
        _
      $region10: #{tpu_custom_call.1} parent=5 // pred_check_branch
        %107 = sbr.rel (%p104) target = $region12
      $region11: #{tpu_custom_call.1} parent=5 // pred_region
        %s108 = ssub.s32 %s12, 1
        // Predicated region
        $region13: #{tpu_custom_call.1} parent=11 // pred_check
          %p109 = pneg %p45
        $region14: #{tpu_custom_call.1} parent=11 // pred_check_branch
          %111 = sbr.rel (%p109) target = $region16
        $region15: #{tpu_custom_call.1} parent=11 // pred_region
          _
        $region16: #{tpu_custom_call.1} parent=11 // pred_fallthru
          _
        // Predicated region
        $region17: #{tpu_custom_call.1} parent=11 // pred_check
          %p112 = pneg %p66
        $region18: #{tpu_custom_call.1} parent=11 // pred_check_branch
          %114 = sbr.rel (%p112) target = $region20
        $region19: #{tpu_custom_call.1} parent=11 // pred_region
          _
        $region20: #{tpu_custom_call.1} parent=11 // pred_fallthru
          _
      $region12: #{tpu_custom_call.1} parent=5 // pred_fallthru
        _
      %p115 = scmp.lt.s32.totalorder %s12, 2
      // Predicated region
      $region21: #{tpu_custom_call.1} parent=5 // pred_check
        %p116 = pneg %p115
      $region22: #{tpu_custom_call.1} parent=5 // pred_check_branch
        %118 = sbr.rel (%p116) target = $region24
      $region23: #{tpu_custom_call.1} parent=5 // pred_region
        _
      $region24: #{tpu_custom_call.1} parent=5 // pred_fallthru
        _
      %p119 = scmp.le.s32.totalorder 1, %s12
      %p120 = scmp.lt.s32.totalorder %s12, 3
      %p121 = pnand %p119, %p120
      %p122 = pneg %p121
      // Predicated region
      $region25: #{tpu_custom_call.1} parent=5 // pred_check
        _
      $region26: #{tpu_custom_call.1} parent=5 // pred_check_branch
        %124 = sbr.rel (%p121) target = $region28
      $region27: #{tpu_custom_call.1} parent=5 // pred_region
        %s125 = ssub.s32 %s12, 1
        %p126 = pneg %p45
        %p127 = pneg %p42
        %p128 = pneg %p66
        %p129 = pneg %p63
        %p130 = pneg %p94
        %p131 = pneg %p91
        %s132 = sand.u32 %s81, 1
        %s133 = scalar_lea.sflag [#allocation5], %s132
        %s134 = sand.u32 %s81, 1
        %s135 = smul.addr %s134, 8
        %s136 = scalar_lea.vmem [#allocation4], %s135
        %p137 = scmp.lt.s32.totalorder %s22, 0
        %s138 = ssub.s32 0, %s22
        %s139 = scalar_select %p137, %s138, %s22
        %s140 = sand.u32 %s139, 1
        %s141 = ssub.s32 0, %s140
        %s142 = scalar_select %p137, %s141, %s140
        %p143 = scmp.ne.s32.totalorder %s142, 0
        %p144 = scmp.lt.s32.totalorder %s142, 0
        %p145 = pnand %p144, %p143
        %p146 = pneg %p145
        %s147 = sadd.s32 %s142, 2
        %s148 = scalar_select %p146, %s147, %s142
        %p149 = scmp.eq.s32.totalorder %s22, 0
        // Predicated region
        $region29: #{tpu_custom_call.1} parent=27 // pred_check
          %p150 = pneg %p149
        $region30: #{tpu_custom_call.1} parent=27 // pred_check_branch
          %152 = sbr.rel (%p150) target = $region32
        $region31: #{tpu_custom_call.1} parent=27 // pred_region
          %s153 = smul.u32 %s21, 2
          %s154 = smul.addr %s153, 8
          %s155 = scalar_lea.hbm %s0, %s154
          // Predicated region
          $region33: #{tpu_custom_call.1} parent=31 // pred_check
            _
          $region34: #{tpu_custom_call.1} parent=31 // pred_check_branch
            %157 = sbr.rel target = $region36
          $region35: #{tpu_custom_call.1} parent=31 // pred_region
            %158 = sst [smem:[#allocation8]] [#allocation7]
            %159 = sst [smem:[#allocation9]] [#allocation6]
          $region36: #{tpu_custom_call.1} parent=31 // pred_fallthru
            _
          %161 = shalt.err (0)
          %s163 = sshll.u32 %s155, 4
          %s164 = int_to_ptr.hbm [resolvable:$true] %s163
          %s165 = sshll.u32 [#allocation2], 4
          %s166 = int_to_ptr.vmem [resolvable:$true] %s165
          %168 = dma.hbm_to_vmem [thread:$0]  %s164, 256, %s166, [#allocation3]
        $region32: #{tpu_custom_call.1} parent=27 // pred_fallthru
          _
        %s169 = sadd.s32 %s22, 1
        %p170 = scmp.lt.s32.totalorder %s169, 1
        // Predicated region
        $region37: #{tpu_custom_call.1} parent=27 // pred_check
          %p171 = pneg %p170
        $region38: #{tpu_custom_call.1} parent=27 // pred_check_branch
          %173 = sbr.rel (%p171) target = $region40
        $region39: #{tpu_custom_call.1} parent=27 // pred_region
          %s174 = ssub.s32 1, %s148
          %s175 = smul.u32 %s169, 128
          %s176 = sshra.s32 %s175, 7
          %s177 = sand.u32 %s175, 127
          %s178 = smul.u32 %s21, 2
          %s179 = sadd.s32 %s176, %s178
          %s180 = smul.addr %s179, 8
          %s181 = scalar_lea.hbm %s0, %s180
          %s182 = smul.u32 %s174, 2
          %s183 = smul.addr %s182, 8
          %s184 = scalar_lea.vmem [#allocation2], %s183
          %s185 = scalar_lea.sflag [#allocation3], %s174
          // Predicated region
          $region41: #{tpu_custom_call.1} parent=39 // pred_check
            _
          $region42: #{tpu_custom_call.1} parent=39 // pred_check_branch
            %187 = sbr.rel target = $region44
          $region43: #{tpu_custom_call.1} parent=39 // pred_region
            %188 = sst [smem:[#allocation8]] [#allocation11]
            %189 = sst [smem:[#allocation9]] [#allocation10]
          $region44: #{tpu_custom_call.1} parent=39 // pred_fallthru
            _
          %191 = shalt.err (0)
          %s193 = sshll.u32 %s181, 4
          %s194 = int_to_ptr.hbm [resolvable:$true] %s193
          %s195 = sshll.u32 %s184, 4
          %s196 = int_to_ptr.vmem [resolvable:$true] %s195
          %198 = dma.hbm_to_vmem [thread:$0]  %s194, 256, %s196, %s185
        $region40: #{tpu_custom_call.1} parent=27 // pred_fallthru
          _
        %s199 = smul.u32 %s148, 2
        %s200 = smul.addr %s199, 8
        %s201 = scalar_lea.vmem [#allocation2], %s200
        %s202 = scalar_lea.sflag [#allocation3], %s148
        %s203 = smul.u32 8, 1
        %s204 = smul.u32 %s203, 2
        %s205 = sshll.u32 %s204, 4
        %206 = dma.done %s202, %s205
        %v207 = vld [vmem:[%s201] sm:$0xff]
        %v208 = vld [vmem:[%s201 + $0x8] sm:$0xff]
        %211 = vrot.lane.b32.xlu0 %v207, 126
        %v212 = vpop.permute.xlu0 %211
        %213 = vrot.lane.b32.xlu0 %v208, 126
        %v214 = vpop.permute.xlu0 %213
        %vm215 = vcmask 1031168
        %v216 = vsel %vm215, %v212, %v214
        %218 = vrot.lane.b32.xlu0 %v207, 124
        %v219 = vpop.permute.xlu0 %218
        %220 = vrot.lane.b32.xlu0 %v208, 124
        %v221 = vpop.permute.xlu0 %220
        %vm222 = vcmask 1014784
        %v223 = vsel %vm222, %v219, %v221
        %v225 = vld [vmem:[%s1] sm:$0xff]
        %v226 = vld [vmem:[%s2] sm:$0xff]
        %228 = vset.pattern.permute.xlu0 0
        %229 = vperm.xlu0 %228, %v226
        %v230 = vpop.permute.xlu0 %229
        %vm232 = vcmask 195584
        %v234 = vsel %vm232, %v225, 0
        %236 = vmatpush.msra.mxu0 0.0
        %237 = vmatpush.msra.mxu0 0.0
        %238 = vmatpush.msra.mxu0 0.0
        %239 = vmatpush.msra.mxu0 0.0
        %240 = vmatpush.msra.mxu0 0.0
        %241 = vmatpush.msra.mxu0 0.0
        %242 = vmatpush.msra.mxu0 0.0
        %243 = vmatpush.msra.mxu0 0.0
        %244 = vmatpush.msra.mxu0 0.0
        %245 = vmatpush.msra.mxu0 0.0
        %246 = vmatpush.msra.mxu0 0.0
        %247 = vmatpush.msra.mxu0 0.0
        %248 = vmatpush.msra.mxu0 0.0
        %249 = vmatpush.msra.mxu0 %v223
        %250 = vmatpush.msra.mxu0 %v216
        %251 = vmatpush.msra.mxu0 %v207
        %252 = vmatmul.f32.gmra.mxu0 %v234
        %v253 = vpop.f32.mrf.mxu0
        %v254 = vadd.f32 %v230, %v253
        %255 = vdwg.mxu0
        %256 = vst [vmem:[%s136] sm:$0xff] %v254
        %s257 = sand.u32 %s81, 1
        %s258 = scalar_lea.sflag [#allocation5], %s257
        %s259 = sand.u32 %s81, 1
        %s260 = smul.addr %s259, 8
        %s261 = scalar_lea.vmem [#allocation4], %s260
        // Predicated region
        $region45: #{tpu_custom_call.1} parent=27 // pred_check
          %p262 = pneg %p91
        $region46: #{tpu_custom_call.1} parent=27 // pred_check_branch
          %264 = sbr.rel (%p262) target = $region48
        $region47: #{tpu_custom_call.1} parent=27 // pred_region
          %266 = vsyncadd %s258, 0
          %s267 = sadd.s32 %s22, %s21
          %s268 = smul.addr %s267, 8
          %s269 = scalar_lea.hbm %s3, %s268
          %s271 = sshll.u32 %s261, 4
          %s272 = int_to_ptr.vmem [resolvable:$true] %s271
          %s273 = sshll.u32 %s269, 4
          %s274 = int_to_ptr.hbm [resolvable:$true] %s273
          %276 = dma.vmem_to_hbm [thread:$0]  %s272, 128, %s274, %s258
        $region48: #{tpu_custom_call.1} parent=27 // pred_fallthru
          _
      $region28: #{tpu_custom_call.1} parent=5 // pred_fallthru
        _
      %p277 = scmp.le.s32.totalorder 2, %s12
      // Predicated region
      $region49: #{tpu_custom_call.1} parent=5 // pred_check
        %p278 = pneg %p277
      $region50: #{tpu_custom_call.1} parent=5 // pred_check_branch
        %280 = sbr.rel (%p278) target = $region52
      $region51: #{tpu_custom_call.1} parent=5 // pred_region
        %s281 = ssub.s32 %s12, 2
        // Predicated region
        $region53: #{tpu_custom_call.1} parent=51 // pred_check
          %p282 = pneg %p97
        $region54: #{tpu_custom_call.1} parent=51 // pred_check_branch
          %284 = sbr.rel (%p282) target = $region56
        $region55: #{tpu_custom_call.1} parent=51 // pred_region
          %s285 = sand.u32 %s82, 1
          %s286 = scalar_lea.sflag [#allocation5], %s285
          %s287 = sand.u32 %s82, 1
          %s288 = smul.addr %s287, 8
          %s289 = scalar_lea.vmem [#allocation4], %s288
          %291 = dma.done %s286, 128
        $region56: #{tpu_custom_call.1} parent=51 // pred_fallthru
          _
      $region52: #{tpu_custom_call.1} parent=5 // pred_fallthru
        _
    $region6: #{tpu_custom_call.1} parent=1 // loop_footer
      %s16 = sadd.s32 1, %s12
    $region7: #{tpu_custom_call.1} parent=1 // loop_footer_branch
      %11 = sbr.rel target = $region3
    $region8: #{tpu_custom_call.1} parent=1 // loop_exit
      _
    %292 = vsyncpa [#allocation5], 1
    %s293 = scalar_lea.sflag [#allocation5], 1
    %294 = vsyncpa %s293, 1
  %295 = vsyncmov [#allocation3]
  %s296 = vpop.sfrf %295
  %p297 = scmp.eq.s32.totalorder %s296, 0
  %p298 = pneg %p297
  %300 = shalt.err (%p298)
  %s301 = scalar_lea.sflag [#allocation3], 1
  %302 = vsyncmov %s301
  %s303 = vpop.sfrf %302
  %p304 = scmp.eq.s32.totalorder %s303, 0
  %p305 = pneg %p304
  %307 = shalt.err (%p305)

</llo_original>
